<compile_context>
chip_gen: v7x
topology: tpu7x:2x2x1
jax: 0.10.0
libtpu: 0.0.40
codegen_flags: <defaults>
</compile_context>

<pallas_src>
import jax
import jax.numpy as jnp
import numpy as np
from jax.experimental import pallas as pl
from jax.experimental.pallas import tpu as pltpu


# ----------------------------------------------------------------------------- math
_INV_SQRT2 = 0.7071067811865476


def _erf_f32(x):
    # Abramowitz-Stegun 7.1.26 polynomial (max abs err ~1.5e-7; far below bf16
    # operand precision).  The divide is pushed to the EUP via approx reciprocal.
    p = jnp.float32(0.3275911)
    a1 = jnp.float32(0.254829592)
    a2 = jnp.float32(-0.284496736)
    a3 = jnp.float32(1.421413741)
    a4 = jnp.float32(-1.453152027)
    a5 = jnp.float32(1.061405429)
    z = jnp.abs(x)
    t = pl.reciprocal(1.0 + p * z, approx=True)
    poly = ((((a5 * t + a4) * t + a3) * t + a2) * t + a1) * t
    y = 1.0 - poly * jnp.exp(-(z * z))
    return jnp.where(x < 0, -y, y)


def _gelu_exact(x):
    # nn.GELU() default (approximate='none'): x * 0.5 * (1 + erf(x / sqrt(2)))
    return 0.5 * x * (1.0 + _erf_f32(x * _INV_SQRT2))


# ----------------------------------------------------------------------------- kernels
def _mlp_kernel(x_ref, fcw_ref, fcb_ref, pjw_ref, pjb_ref, o_ref, acc_ref):
    """Hidden dim tiled: accumulate partial c_proj products over hidden blocks."""
    j = pl.program_id(1)

    @pl.when(j == 0)
    def _init():
        acc_ref[...] = jnp.zeros_like(acc_ref)

    # c_fc partial: (tm, C) x (C, th) -> f32, bias+GELU fused in the epilogue.
    h = jnp.dot(x_ref[...], fcw_ref[...], preferred_element_type=jnp.float32)
    h = _gelu_exact(h + fcb_ref[...])

    # c_proj partial: (tm, th) x (th, C) -> f32 accumulate; hidden never leaves VMEM.
    acc_ref[...] += jnp.dot(h.astype(pjw_ref.dtype), pjw_ref[...],
                            preferred_element_type=jnp.float32)

    @pl.when(j == pl.num_programs(1) - 1)
    def _finalize():
        o_ref[...] = (acc_ref[...] + pjb_ref[...]).astype(o_ref.dtype)


def _mlp_kernel_single(x_ref, fcw_ref, fcb_ref, pjw_ref, pjb_ref, o_ref):
    """Whole hidden dim fits one block: no f32 accumulator scratch round trips."""
    h = jnp.dot(x_ref[...], fcw_ref[...], preferred_element_type=jnp.float32)
    h = _gelu_exact(h + fcb_ref[...])
    y = jnp.dot(h.astype(pjw_ref.dtype), pjw_ref[...],
                preferred_element_type=jnp.float32)
    o_ref[...] = (y + pjb_ref[...]).astype(o_ref.dtype)


# ----------------------------------------------------------------------------- wrapper
def _round_up(x, m):
    return (x + m - 1) // m * m


def _choose_tile(dim, target, mults=(256, 128)):
    """Largest tile <= target dividing `dim`, preferring multiples of 256 (MXU is
    2x256^2 on v6e/v7x), then 128; otherwise the full dim (always legal)."""
    for mult in mults:
        t = (min(target, dim) // mult) * mult
        while t >= mult:
            if dim % t == 0:
                return t
            t -= mult
    return dim


def mlp_pallas(x2, fc_w, fc_b, proj_w, proj_b, *,
               tm_target=512, th_target=1024, out_dtype=None):
    """Fused y = c_proj(gelu(c_fc(x2))); x2: (M, C), fc_w: (C, 4C), proj_w: (4C, C)."""
    M, C = x2.shape
    Cw, H = fc_w.shape
    assert C == Cw and proj_w.shape == (H, C), (x2.shape, fc_w.shape, proj_w.shape)
    out_dtype = out_dtype or x2.dtype

    op_dtype = jnp.bfloat16
    x2 = x2.astype(op_dtype)           # no-op if already bf16
    fc_w = fc_w.astype(op_dtype)
    proj_w = proj_w.astype(op_dtype)
    fc_b2 = fc_b.reshape(1, H).astype(jnp.float32)
    pj_b2 = proj_b.reshape(1, C).astype(jnp.float32)

    # Row tiling: pad M up to the row tile so every block is full (unmasked,
    # lane-dense stores).
    sub = 16  # bf16 sublane packing multiple
    tm = tm_target if M >= tm_target else _round_up(M, sub)
    m_pad = _round_up(M, tm)
    if m_pad != M:
        # TODO(synk): a masked ragged-tail tile would avoid this pad/slice copy for
        # very large M; small/aligned M (the common case) never hits it.
        x2 = jnp.pad(x2, ((0, m_pad - M), (0, 0)))

    th = _choose_tile(H, th_target)
    grid = (m_pad // tm, H // th)
    single = grid[1] == 1

    # Explicit VMEM budget from the chosen tiles (double-buffered inputs/outputs,
    # plus the f32 accumulator), with 2x headroom, capped at 48 MiB (v7x has 64 MiB).
    out_bytes = jnp.dtype(out_dtype).itemsize
    est = (2 * tm * C * 2            # x tile (bf16)
           + 2 * C * th * 2          # fc_w tile
           + 2 * th * 4              # fc_b tile (f32)
           + 2 * th * C * 2          # proj_w tile
           + 2 * C * 4               # proj_b
           + 2 * tm * C * out_bytes  # output tile
           + (0 if single else tm * C * 4))   # f32 accumulator scratch
    vmem_limit = int(min(48 * 1024 * 1024,
                         max(2 * est + (1 << 20), 8 * 1024 * 1024)))

    # Advisory cost estimate so XLA schedules around the custom call sensibly.
    cost = pl.CostEstimate(
        flops=2 * m_pad * H * C * 2,                       # two matmuls
        transcendentals=m_pad * H,                         # exp in GELU epilogue
        bytes_accessed=((m_pad // tm) * (C * H + H * C) * 2   # weights re-streamed
                        + m_pad * C * 2 + m_pad * C * out_bytes))

    in_specs = [
        pl.BlockSpec((tm, C), lambda i, j: (i, 0)),    # x row tile (constant over j)
        pl.BlockSpec((C, th), lambda i, j: (0, j)),    # fc_w hidden block
        pl.BlockSpec((1, th), lambda i, j: (0, j)),    # fc bias hidden block
        pl.BlockSpec((th, C), lambda i, j: (j, 0)),    # proj_w hidden block
        pl.BlockSpec((1, C), lambda i, j: (0, 0)),     # proj bias
    ]
    out_spec = pl.BlockSpec((tm, C), lambda i, j: (i, 0))

    out = pl.pallas_call(
        _mlp_kernel_single if single else _mlp_kernel,
        out_shape=jax.ShapeDtypeStruct((m_pad, C), out_dtype),
        grid_spec=pltpu.PrefetchScalarGridSpec(
            num_scalar_prefetch=0,
            grid=grid,
            in_specs=in_specs,
            out_specs=out_spec,
            scratch_shapes=([] if single
                            else [pltpu.VMEM((tm, C), jnp.float32)]),
        ),
        compiler_params=pltpu.CompilerParams(
            dimension_semantics=("parallel", "arbitrary"),
            vmem_limit_bytes=vmem_limit,
        ),
        cost_estimate=cost,
    )(x2, fc_w, fc_b2, proj_w, pj_b2)
    return out[:M] if m_pad != M else out


def mlp_forward(params, x, **kwargs):
    """nanoGPT MLP: dropout(c_proj(gelu(c_fc(x)))).  Weights stored (in, out)."""
    B, T, C = x.shape
    y = mlp_pallas(x.reshape(B * T, C),
                   params["fc_w"], params["fc_b"],
                   params["proj_w"], params["proj_b"], **kwargs)
    # TODO(synk): training-mode dropout (p > 0) would need pltpu PRNG; p=0.0 / eval
    # mode is the identity, matching nn.Dropout in eval.
    return y.reshape(B, T, C)


# ----------------------------------------------------------------------------- reference
def mlp_reference(params, x):
    h = jnp.dot(x, params["fc_w"]) + params["fc_b"]
    h = jax.nn.gelu(h, approximate=False)
    return jnp.dot(h, params["proj_w"]) + params["proj_b"]


# ----------------------------------------------------------------------------- main
if __name__ == "__main__":
    key = jax.random.PRNGKey(0)
    ks = jax.random.split(key, 10)

    # Small config consistent with the module: n_embd=32, bias=True, dropout=0.0.
    B, T, C = 2, 8, 32
    x = jax.random.normal(ks[0], (B, T, C), jnp.float32)
    params = dict(
        fc_w=jax.random.normal(ks[1], (C, 4 * C), jnp.float32) * 0.02,
        fc_b=jax.random.normal(ks[2], (4 * C,), jnp.float32) * 0.1,
        proj_w=jax.random.normal(ks[3], (4 * C, C), jnp.float32) * 0.02,
        proj_b=jax.random.normal(ks[4], (C,), jnp.float32) * 0.1,
    )
    y = jax.block_until_ready(mlp_forward(params, x))
    assert y.shape == (B, T, C)
    assert bool(jnp.all(jnp.isfinite(y)))
    ref = mlp_reference(params, x)
    np.testing.assert_allclose(np.asarray(y), np.asarray(ref), atol=2e-2, rtol=2e-2)

    # Medium slab: exercises full-hidden single-block path (H = 1024 fits one tile).
    B2, T2, C2 = 2, 64, 256
    x_big = jax.random.normal(ks[5], (B2, T2, C2), jnp.float32)
    params_big = dict(
        fc_w=jax.random.normal(ks[6], (C2, 4 * C2), jnp.float32) * 0.02,
        fc_b=jax.random.normal(ks[7], (4 * C2,), jnp.float32) * 0.1,
        proj_w=jax.random.normal(ks[8], (4 * C2, C2), jnp.float32) * 0.02,
        proj_b=jax.random.normal(ks[9], (C2,), jnp.float32) * 0.1,
    )
    ref_big = mlp_reference(params_big, x_big)

    y_big = jax.block_until_ready(mlp_forward(params_big, x_big))
    assert y_big.shape == (B2, T2, C2)
    np.testing.assert_allclose(np.asarray(y_big), np.asarray(ref_big),
                               atol=2e-2, rtol=2e-2)

    # Same data with a smaller hidden tile to exercise the accumulate-over-j path.
    y_acc = jax.block_until_ready(mlp_forward(params_big, x_big, th_target=256))
    np.testing.assert_allclose(np.asarray(y_acc), np.asarray(ref_big),
                               atol=2e-2, rtol=2e-2)

    print("KERNEL_OK")
</pallas_src>

<mosaic_0001>
module attributes {stable_mosaic.version = 11 : i64} {
  func.func @_mlp_kernel_single(%arg0: i32, %arg1: i32, %arg2: memref<16x32xbf16, #tpu.memory_space<vmem>>, %arg3: memref<32x128xbf16, #tpu.memory_space<vmem>>, %arg4: memref<1x128xf32, #tpu.memory_space<vmem>>, %arg5: memref<128x32xbf16, #tpu.memory_space<vmem>>, %arg6: memref<1x32xf32, #tpu.memory_space<vmem>>, %arg7: memref<16x32xf32, #tpu.memory_space<vmem>>) attributes {dimension_semantics = [#tpu.dimension_semantics<parallel>, #tpu.dimension_semantics<arbitrary>], iteration_bounds = array<i64: 1, 1>, scalar_prefetch = 0 : i64, scratch_operands = 0 : i64, tpu.core_type = #tpu.core_type<tc>, window_params = [{transform_indices = @transform_0, window_bounds = array<i64: 16, 32>}, {transform_indices = @transform_1, window_bounds = array<i64: 32, 128>}, {transform_indices = @transform_2, window_bounds = array<i64: 1, 128>}, {transform_indices = @transform_3, window_bounds = array<i64: 128, 32>}, {pipeline_mode = #tpu.pipeline_mode<synchronous>, transform_indices = @transform_4, window_bounds = array<i64: 1, 32>}, {transform_indices = @transform_5, window_bounds = array<i64: 16, 32>}]} {
    %c0 = arith.constant 0 : index
    %c0_0 = arith.constant 0 : index
    %0 = vector.load %arg2[%c0, %c0_0] : memref<16x32xbf16, #tpu.memory_space<vmem>>, vector<16x32xbf16>
    %c0_1 = arith.constant 0 : index
    %c0_2 = arith.constant 0 : index
    %1 = vector.load %arg3[%c0_1, %c0_2] : memref<32x128xbf16, #tpu.memory_space<vmem>>, vector<32x128xbf16>
    %cst = arith.constant dense<0.000000e+00> : vector<16x128xf32>
    %2 = tpu.matmul %0, %1, %cst {dimension_numbers = #tpu.dot_dimension_numbers<[1], [0], [0], [1], [0, 0, 1, 1], [], []>} : vector<16x32xbf16>, vector<32x128xbf16>, vector<16x128xf32> -> vector<16x128xf32>
    %c0_3 = arith.constant 0 : index
    %c0_4 = arith.constant 0 : index
    %3 = vector.load %arg4[%c0_3, %c0_4] : memref<1x128xf32, #tpu.memory_space<vmem>>, vector<1x128xf32>
    %4 = vector.broadcast %3 : vector<1x128xf32> to vector<16x128xf32>
    %5 = arith.addf %2, %4 : vector<16x128xf32>
    %cst_5 = arith.constant 5.000000e-01 : f32
    %6 = vector.broadcast %cst_5 : f32 to vector<16x128xf32>
    %7 = arith.mulf %6, %5 : vector<16x128xf32>
    %cst_6 = arith.constant 0.707106769 : f32
    %8 = vector.broadcast %cst_6 : f32 to vector<16x128xf32>
    %9 = arith.mulf %5, %8 : vector<16x128xf32>
    %10 = math.absf %9 : vector<16x128xf32>
    %cst_7 = arith.constant 0.327591091 : f32
    %11 = vector.broadcast %cst_7 : f32 to vector<16x128xf32>
    %12 = arith.mulf %11, %10 : vector<16x128xf32>
    %cst_8 = arith.constant 1.000000e+00 : f32
    %13 = vector.broadcast %cst_8 : f32 to vector<16x128xf32>
    %14 = arith.addf %13, %12 : vector<16x128xf32>
    %15 = tpu.reciprocal %14 {approx = true} : vector<16x128xf32> -> vector<16x128xf32>
    %cst_9 = arith.constant 1.06140542 : f32
    %16 = vector.broadcast %cst_9 : f32 to vector<16x128xf32>
    %17 = arith.mulf %16, %15 : vector<16x128xf32>
    %cst_10 = arith.constant -1.45315206 : f32
    %18 = vector.broadcast %cst_10 : f32 to vector<16x128xf32>
    %19 = arith.addf %17, %18 : vector<16x128xf32>
    %20 = arith.mulf %19, %15 : vector<16x128xf32>
    %cst_11 = arith.constant 1.42141378 : f32
    %21 = vector.broadcast %cst_11 : f32 to vector<16x128xf32>
    %22 = arith.addf %20, %21 : vector<16x128xf32>
    %23 = arith.mulf %22, %15 : vector<16x128xf32>
    %cst_12 = arith.constant -0.284496725 : f32
    %24 = vector.broadcast %cst_12 : f32 to vector<16x128xf32>
    %25 = arith.addf %23, %24 : vector<16x128xf32>
    %26 = arith.mulf %25, %15 : vector<16x128xf32>
    %cst_13 = arith.constant 0.254829586 : f32
    %27 = vector.broadcast %cst_13 : f32 to vector<16x128xf32>
    %28 = arith.addf %26, %27 : vector<16x128xf32>
    %29 = arith.mulf %28, %15 : vector<16x128xf32>
    %30 = arith.mulf %10, %10 : vector<16x128xf32>
    %cst_14 = arith.constant 0.000000e+00 : f32
    %31 = vector.broadcast %cst_14 : f32 to vector<16x128xf32>
    %32 = arith.subf %31, %30 : vector<16x128xf32>
    %33 = math.exp %32 : vector<16x128xf32>
    %34 = arith.mulf %29, %33 : vector<16x128xf32>
    %cst_15 = arith.constant 1.000000e+00 : f32
    %35 = vector.broadcast %cst_15 : f32 to vector<16x128xf32>
    %36 = arith.subf %35, %34 : vector<16x128xf32>
    %cst_16 = arith.constant 0.000000e+00 : f32
    %37 = vector.broadcast %cst_16 : f32 to vector<16x128xf32>
    %38 = arith.cmpf olt, %9, %37 : vector<16x128xf32>
    %cst_17 = arith.constant 0.000000e+00 : f32
    %39 = vector.broadcast %cst_17 : f32 to vector<16x128xf32>
    %40 = arith.subf %39, %36 : vector<16x128xf32>
    %41 = arith.select %38, %40, %36 : vector<16x128xi1>, vector<16x128xf32>
    %cst_18 = arith.constant 1.000000e+00 : f32
    %42 = vector.broadcast %cst_18 : f32 to vector<16x128xf32>
    %43 = arith.addf %42, %41 : vector<16x128xf32>
    %44 = arith.mulf %7, %43 : vector<16x128xf32>
    %45 = arith.truncf %44 : vector<16x128xf32> to vector<16x128xbf16>
    %c0_19 = arith.constant 0 : index
    %c0_20 = arith.constant 0 : index
    %46 = vector.load %arg5[%c0_19, %c0_20] : memref<128x32xbf16, #tpu.memory_space<vmem>>, vector<128x32xbf16>
    %cst_21 = arith.constant dense<0.000000e+00> : vector<16x32xf32>
    %47 = tpu.matmul %45, %46, %cst_21 {dimension_numbers = #tpu.dot_dimension_numbers<[1], [0], [0], [1], [0, 0, 1, 1], [], []>} : vector<16x128xbf16>, vector<128x32xbf16>, vector<16x32xf32> -> vector<16x32xf32>
    %c0_22 = arith.constant 0 : index
    %c0_23 = arith.constant 0 : index
    %48 = vector.load %arg6[%c0_22, %c0_23] : memref<1x32xf32, #tpu.memory_space<vmem>>, vector<1x32xf32>
    %49 = vector.broadcast %48 : vector<1x32xf32> to vector<16x32xf32>
    %50 = arith.addf %47, %49 : vector<16x32xf32>
    %c0_24 = arith.constant 0 : index
    %c0_25 = arith.constant 0 : index
    %51 = vector.load %arg7[%c0_24, %c0_25] : memref<16x32xf32, #tpu.memory_space<vmem>>, vector<16x32xf32>
    tpu.vector_store %arg7[%c0_24, %c0_25], %50 {strides = array<i32>} : memref<16x32xf32, #tpu.memory_space<vmem>>, vector<16x32xf32>,
    return
  }
  func.func @transform_0(%arg0: i32, %arg1: i32) -> (i32, i32) {
    %c0_i32 = arith.constant 0 : i32
    %c0_i32_0 = arith.constant 0 : i32
    return %arg0, %c0_i32 : i32, i32
  }
  func.func @transform_1(%arg0: i32, %arg1: i32) -> (i32, i32) {
    %c0_i32 = arith.constant 0 : i32
    %c0_i32_0 = arith.constant 0 : i32
    return %c0_i32, %arg1 : i32, i32
  }
  func.func @transform_2(%arg0: i32, %arg1: i32) -> (i32, i32) {
    %c0_i32 = arith.constant 0 : i32
    %c0_i32_0 = arith.constant 0 : i32
    return %c0_i32, %arg1 : i32, i32
  }
  func.func @transform_3(%arg0: i32, %arg1: i32) -> (i32, i32) {
    %c0_i32 = arith.constant 0 : i32
    %c0_i32_0 = arith.constant 0 : i32
    return %arg1, %c0_i32 : i32, i32
  }
  func.func @transform_4(%arg0: i32, %arg1: i32) -> (i32, i32) {
    %c0_i32 = arith.constant 0 : i32
    %c0_i32_0 = arith.constant 0 : i32
    %c0_i32_1 = arith.constant 0 : i32
    return %c0_i32, %c0_i32_0 : i32, i32
  }
  func.func @transform_5(%arg0: i32, %arg1: i32) -> (i32, i32) {
    %c0_i32 = arith.constant 0 : i32
    %c0_i32_0 = arith.constant 0 : i32
    return %arg0, %c0_i32 : i32, i32
  }
}

</mosaic_0001>

<llo_original>
// kernel: tpu_custom_call.1
$region0: #{tpu_custom_call.1}
  #allocation0 [shape = 'u32[]', space=smem, size = 0x4, offset = 0x4, fixed_abs, tag = 'smem constant byte address 0x4 - core index']
  #allocation1 [shape = 'u32[144,128]{1,0:T(1,128)}', space=vmem, size = 0x12000, scoped, tag = 'internal scratch']
  %s0 = inlined_call_operand.vmem [shape: bf16[16,32], index: 0, kind: input, shape index: {}]
  %s1 = inlined_call_operand.vmem [shape: bf16[32,128], index: 1, kind: input, shape index: {}]
  %s2 = inlined_call_operand.vmem [shape: f32[1,128], index: 2, kind: input, shape index: {}]
  %s3 = inlined_call_operand.vmem [shape: bf16[128,32], index: 3, kind: input, shape index: {}]
  %s4 = inlined_call_operand.vmem [shape: f32[1,32], index: 4, kind: input, shape index: {}]
  %s5 = inlined_call_operand.hbm [shape: f32[16,32], index: 5, kind: output, shape index: {}]
  %s6 = sld [smem:[#allocation0]]
  $region30: #{tpu_custom_call.1} parent=0
    _
  %s8 = ssub.s32 1, %s6
  %s9 = scalar_select 0, %s8, %s6
  $region1: #{tpu_custom_call.1} parent=0
    #allocation2 [shape = 'u8[8192]{0}', space=vmem, size = 0x2000, scoped, tag = 'output window, operand 0, single buffered']
    #allocation3 [shape = 's32[1]{0}', space=sflag, size = 0x4, scoped, tag = 'scoped memory for tpu_custom_call.1']
    %10 = vsyncpa [#allocation3], 0
    // Predicated region
    $region2: #{tpu_custom_call.1} parent=1 // pred_check
      _
    $region3: #{tpu_custom_call.1} parent=1 // pred_check_branch
      %12 = sbr.rel (0) target = $region5
    $region4: #{tpu_custom_call.1} parent=1 // pred_region
      _
    $region5: #{tpu_custom_call.1} parent=1 // pred_fallthru
      _
    // Predicated region
    $region6: #{tpu_custom_call.1} parent=1 // pred_check
      _
    $region7: #{tpu_custom_call.1} parent=1 // pred_check_branch
      %14 = sbr.rel (0) target = $region9
    $region8: #{tpu_custom_call.1} parent=1 // pred_region
      _
    $region9: #{tpu_custom_call.1} parent=1 // pred_fallthru
      _
    // Predicated region
    $region10: #{tpu_custom_call.1} parent=1 // pred_check
      _
    $region11: #{tpu_custom_call.1} parent=1 // pred_check_branch
      %16 = sbr.rel (0) target = $region13
    $region12: #{tpu_custom_call.1} parent=1 // pred_region
      _
    $region13: #{tpu_custom_call.1} parent=1 // pred_fallthru
      _
    // Predicated region
    $region14: #{tpu_custom_call.1} parent=1 // pred_check
      _
    $region15: #{tpu_custom_call.1} parent=1 // pred_check_branch
      %18 = sbr.rel (0) target = $region17
    $region16: #{tpu_custom_call.1} parent=1 // pred_region
      _
    $region17: #{tpu_custom_call.1} parent=1 // pred_fallthru
      _
    // Predicated region
    $region18: #{tpu_custom_call.1} parent=1 // pred_check
      _
    $region19: #{tpu_custom_call.1} parent=1 // pred_check_branch
      %20 = sbr.rel (0) target = $region21
    $region20: #{tpu_custom_call.1} parent=1 // pred_region
      _
    $region21: #{tpu_custom_call.1} parent=1 // pred_fallthru
      _
    %v22 = vld [vmem:[%s0] sm:$0xf]
    %v23 = vld [vmem:[%s0 + $0x4] sm:$0xf]
    %v24 = vld [vmem:[%s1] sm:$0xf]
    %v25 = vld [vmem:[%s1 + $0x4] sm:$0xf]
    %v26 = vld [vmem:[%s1 + $0x8] sm:$0xf]
    %v27 = vld [vmem:[%s1 + $0xc] sm:$0xf]
    %v28 = vld [vmem:[%s2] sm:$0x1]
    %v30 = vlaneseq
    %v31 = vshrl.u32 %v30, 7
    %v32 = vsub.s32 0, %v31
    %v33 = vrot.slane %v28, %v32
    %v37 = vunpack.c.l.b16 %v22
    %v38 = vunpack.c.l.b16 %v23
    %v39 = vpack.c.b16 %v38, %v37
    %v44 = vunpack.c.l.b16 %v24
    %v45 = vunpack.c.l.b16 %v25
    %v46 = vunpack.c.l.b16 %v26
    %v47 = vunpack.c.l.b16 %v27
    %v48 = vpack.c.b16 %v45, %v44
    %v49 = vpack.c.b16 %v47, %v46
    %vm52 = vcmask 261120
    %v54 = vsel %vm52, %v39, 0
    %56 = vmatprep.subr.bf16.mxu0 0
    %57 = vmatpush1.bf16.msra.mxu0 %v48
    %58 = vmatprep.subr.bf16.mxu0 0
    %59 = vmatpush1.bf16.msra.mxu0 %v49
    %60 = vmatprep.subr.bf16.mxu0 0
    %61 = vmatpush1.bf16.msra.mxu0 0
    %62 = vmatprep.subr.bf16.mxu0 0
    %63 = vmatpush1.bf16.msra.mxu0 0
    %64 = vmatprep.subr.bf16.mxu0 0
    %65 = vmatpush1.bf16.msra.mxu0 0
    %66 = vmatprep.subr.bf16.mxu0 0
    %67 = vmatpush1.bf16.msra.mxu0 0
    %68 = vmatprep.subr.bf16.mxu0 0
    %69 = vmatpush1.bf16.msra.mxu0 0
    %70 = vmatprep.subr.bf16.mxu0 0
    %71 = vmatpush1.bf16.msra.mxu0 0
    %72 = vmatprep.subr.bf16.mxu0 0
    %73 = vmatpush1.bf16.msra.mxu0 0
    %74 = vmatprep.subr.bf16.mxu0 0
    %75 = vmatpush1.bf16.msra.mxu0 0
    %76 = vmatprep.subr.bf16.mxu0 0
    %77 = vmatpush1.bf16.msra.mxu0 0
    %78 = vmatprep.subr.bf16.mxu0 0
    %79 = vmatpush1.bf16.msra.mxu0 0
    %80 = vmatprep.subr.bf16.mxu0 0
    %81 = vmatpush1.bf16.msra.mxu0 0
    %82 = vmatprep.subr.bf16.mxu0 0
    %83 = vmatpush1.bf16.msra.mxu0 0
    %84 = vmatprep.subr.bf16.mxu0 0
    %85 = vmatpush1.bf16.msra.mxu0 0
    %86 = vmatprep.subr.bf16.mxu0 0
    %87 = vmatpush1.bf16.msra.mxu0 0
    %88 = vmatprep.mubr.bf16.mxu0 0
    %89 = vmatmul.mubr.bf16.gmra.mrb[0].mxu0 %v54
    %v90 = vpop.f32.mrb[0].mxu0
    %v91 = vadd.f32 %v33, %v90
    %v92 = vpop.f32.mrb[0].mxu0
    %v93 = vpop.f32.mrb[0].mxu0
    %v94 = vadd.f32 %v33, %v93
    %v95 = vpop.f32.mrb[0].mxu0
    %96 = vdwg.mxu0
    %v97 = vmul.f32 %v91, 0.5
    %v98 = vmul.f32 %v94, 0.5
    %v99 = vmul.f32 %v91, 0.70710677
    %v100 = vmul.f32 %v94, 0.70710677
    %v101 = vand.u32 2147483647, %v99
    %v102 = vand.u32 2147483647, %v100
    %v103 = vmul.f32 %v101, 0.3275911
    %v104 = vmul.f32 %v102, 0.3275911
    %v105 = vadd.f32 %v103, 1.0
    %v106 = vadd.f32 %v104, 1.0
    %v107 = vrcp.pop %v105
    %v108 = vrcp.pop %v106
    %v109 = vmul.f32 %v107, 1.0614054
    %v110 = vmul.f32 %v108, 1.0614054
    %v111 = vadd.f32 %v109, -1.4531521
    %v112 = vadd.f32 %v110, -1.4531521
    %v113 = vmul.f32 %v111, %v107
    %v114 = vmul.f32 %v112, %v108
    %v115 = vadd.f32 %v113, 1.4214138
    %v116 = vadd.f32 %v114, 1.4214138
    %v117 = vmul.f32 %v115, %v107
    %v118 = vmul.f32 %v116, %v108
    %v119 = vadd.f32 %v117, -0.28449672
    %v120 = vadd.f32 %v118, -0.28449672
    %v121 = vmul.f32 %v119, %v107
    %v122 = vmul.f32 %v120, %v108
    %v123 = vadd.f32 %v121, 0.2548296
    %v124 = vadd.f32 %v122, 0.2548296
    %v125 = vmul.f32 %v123, %v107
    %v126 = vmul.f32 %v124, %v108
    %v127 = vmul.f32 %v101, %v101
    %v128 = vmul.f32 %v102, %v102
    %v129 = vsub.f32 0.0, %v127
    %v130 = vsub.f32 0.0, %v128
    %v131 = vmul.f32 %v129, 1.442695
    %v132 = vpow.pop %v131
    %v133 = vmul.f32 %v130, 1.442695
    %v134 = vpow.pop %v133
    %v135 = vmul.f32 %v125, %v132
    %v136 = vmul.f32 %v126, %v134
    %v137 = vsub.f32 1.0, %v135
    %v138 = vsub.f32 1.0, %v136
    %vm139 = vcmp.lt.f32.partialorder %v99, 0.0
    %vm140 = vcmp.lt.f32.partialorder %v100, 0.0
    %v141 = vsub.f32 0.0, %v137
    %v142 = vsub.f32 0.0, %v138
    %v143 = vsel %vm139, %v141, %v137
    %v144 = vsel %vm140, %v142, %v138
    %v145 = vadd.f32 %v143, 1.0
    %v146 = vadd.f32 %v144, 1.0
    %v147 = vmul.f32 %v97, %v145
    %v148 = vmul.f32 %v98, %v146
    %v149 = vpack.c.bf16 %v148, %v147
    %v150 = vld [vmem:[%s3] sm:$0xf]
    %v151 = vld [vmem:[%s3 + $0x4] sm:$0xf]
    %v152 = vld [vmem:[%s3 + $0x8] sm:$0xf]
    %v153 = vld [vmem:[%s3 + $0xc] sm:$0xf]
    %v154 = vld [vmem:[%s3 + $0x10] sm:$0xf]
    %v155 = vld [vmem:[%s3 + $0x14] sm:$0xf]
    %v156 = vld [vmem:[%s3 + $0x18] sm:$0xf]
    %v157 = vld [vmem:[%s3 + $0x1c] sm:$0xf]
    %v158 = vld [vmem:[%s3 + $0x20] sm:$0xf]
    %v159 = vld [vmem:[%s3 + $0x24] sm:$0xf]
    %v160 = vld [vmem:[%s3 + $0x28] sm:$0xf]
    %v161 = vld [vmem:[%s3 + $0x2c] sm:$0xf]
    %v162 = vld [vmem:[%s3 + $0x30] sm:$0xf]
    %v163 = vld [vmem:[%s3 + $0x34] sm:$0xf]
    %v164 = vld [vmem:[%s3 + $0x38] sm:$0xf]
    %v165 = vld [vmem:[%s3 + $0x3c] sm:$0xf]
    %v166 = vld [vmem:[%s4] sm:$0x1]
    %v168 = vlaneseq
    %v169 = vshrl.u32 %v168, 7
    %v170 = vsub.s32 0, %v169
    %v171 = vrot.slane %v166, %v170
    %v189 = vunpack.c.l.b16 %v150
    %v190 = vunpack.c.l.b16 %v151
    %v191 = vunpack.c.l.b16 %v152
    %v192 = vunpack.c.l.b16 %v153
    %v193 = vunpack.c.l.b16 %v154
    %v194 = vunpack.c.l.b16 %v155
    %v195 = vunpack.c.l.b16 %v156
    %v196 = vunpack.c.l.b16 %v157
    %v197 = vunpack.c.l.b16 %v158
    %v198 = vunpack.c.l.b16 %v159
    %v199 = vunpack.c.l.b16 %v160
    %v200 = vunpack.c.l.b16 %v161
    %v201 = vunpack.c.l.b16 %v162
    %v202 = vunpack.c.l.b16 %v163
    %v203 = vunpack.c.l.b16 %v164
    %v204 = vunpack.c.l.b16 %v165
    %v205 = vpack.c.b16 %v190, %v189
    %v206 = vpack.c.b16 %v192, %v191
    %v207 = vpack.c.b16 %v194, %v193
    %v208 = vpack.c.b16 %v196, %v195
    %v209 = vpack.c.b16 %v198, %v197
    %v210 = vpack.c.b16 %v200, %v199
    %v211 = vpack.c.b16 %v202, %v201
    %v212 = vpack.c.b16 %v204, %v203
    %221 = vmatprep.subr.bf16.mxu0 0
    %222 = vmatpush1.bf16.msra.mxu0 %v205
    %223 = vmatprep.subr.bf16.mxu0 0
    %224 = vmatpush1.bf16.msra.mxu0 %v206
    %225 = vmatprep.subr.bf16.mxu0 0
    %226 = vmatpush1.bf16.msra.mxu0 %v207
    %227 = vmatprep.subr.bf16.mxu0 0
    %228 = vmatpush1.bf16.msra.mxu0 %v208
    %229 = vmatprep.subr.bf16.mxu0 0
    %230 = vmatpush1.bf16.msra.mxu0 %v209
    %231 = vmatprep.subr.bf16.mxu0 0
    %232 = vmatpush1.bf16.msra.mxu0 %v210
    %233 = vmatprep.subr.bf16.mxu0 0
    %234 = vmatpush1.bf16.msra.mxu0 %v211
    %235 = vmatprep.subr.bf16.mxu0 0
    %236 = vmatpush1.bf16.msra.mxu0 %v212
    %237 = vmatprep.subr.bf16.mxu0 0
    %238 = vmatpush1.bf16.msra.mxu0 0
    %239 = vmatprep.subr.bf16.mxu0 0
    %240 = vmatpush1.bf16.msra.mxu0 0
    %241 = vmatprep.subr.bf16.mxu0 0
    %242 = vmatpush1.bf16.msra.mxu0 0
    %243 = vmatprep.subr.bf16.mxu0 0
    %244 = vmatpush1.bf16.msra.mxu0 0
    %245 = vmatprep.subr.bf16.mxu0 0
    %246 = vmatpush1.bf16.msra.mxu0 0
    %247 = vmatprep.subr.bf16.mxu0 0
    %248 = vmatpush1.bf16.msra.mxu0 0
    %249 = vmatprep.subr.bf16.mxu0 0
    %250 = vmatpush1.bf16.msra.mxu0 0
    %251 = vmatprep.subr.bf16.mxu0 0
    %252 = vmatpush1.bf16.msra.mxu0 0
    %253 = vmatprep.mubr.bf16.mxu0 0
    %254 = vmatmul.mubr.bf16.gmra.mrb[0].mxu0 %v149
    %v255 = vpop.f32.mrb[0].mxu0
    %v256 = vadd.f32 %v171, %v255
    %v257 = vpop.f32.mrb[0].mxu0
    %v258 = vpop.f32.mrb[0].mxu0
    %v259 = vadd.f32 %v171, %v258
    %v260 = vpop.f32.mrb[0].mxu0
    %261 = vdwg.mxu0
    %262 = vst.msk [vmem:[#allocation2] sm:$0xff] %vm52, %v256
    %263 = vst.msk [vmem:[#allocation2 + $0x8] sm:$0xff] %vm52, %v259
    // Predicated region
    $region22: #{tpu_custom_call.1} parent=1 // pred_check
      _
    $region23: #{tpu_custom_call.1} parent=1 // pred_check_branch
      %265 = sbr.rel (0) target = $region25
    $region24: #{tpu_custom_call.1} parent=1 // pred_region
      %s267 = ssub.s32 256, 256
      %268 = vsyncadd [#allocation3], %s267
      %s269 = sshll.u32 [#allocation2], 4
      %s270 = int_to_ptr.vmem [resolvable:$true] %s269
      %275 = dma.vmem_to_hbm [thread:$0]  %s270, 256, %s5, [#allocation3], 128, 128, 8
    $region25: #{tpu_custom_call.1} parent=1 // pred_fallthru
      _
    // Predicated region
    $region26: #{tpu_custom_call.1} parent=1 // pred_check
      _
    $region27: #{tpu_custom_call.1} parent=1 // pred_check_branch
      %277 = sbr.rel (0) target = $region29
    $region28: #{tpu_custom_call.1} parent=1 // pred_region
      %278 = dma.done [#allocation3], 256
    $region29: #{tpu_custom_call.1} parent=1 // pred_fallthru
      _
    %279 = vsyncpa [#allocation3], 1

</llo_original>
